<compile_context>
chip_gen: v6e
topology: v6e:2x2x1
jax: 0.10.0
libtpu: 0.0.40
codegen_flags: <defaults>
</compile_context>

<pallas_src>
import functools
import math

import jax
import jax.numpy as jnp
from jax import lax
from jax.experimental import pallas as pl
from jax.experimental.pallas import tpu as pltpu


def _round_up(v: int, m: int) -> int:
    return ((v + m - 1) // m) * m


def _pui_partial_kernel(x_ref, y_ref, gram_ref, sx_ref, sx2_ref, sy2_ref,
                        *, tile_rows: int, inner_blocks: int,
                        valid_rows: int, need_mask: bool):
    """Accumulate packed Gram + column statistics for one N-split (grid axis 0)."""
    kk = pl.program_id(1)

    @pl.when(kk == 0)
    def _init():
        gram_ref[...] = jnp.zeros_like(gram_ref)
        sx_ref[...] = jnp.zeros_like(sx_ref)
        sx2_ref[...] = jnp.zeros_like(sx2_ref)
        sy2_ref[...] = jnp.zeros_like(sy2_ref)

    xv = x_ref[...]                      # (tile_rows, GK), native dtype
    yv = y_ref[...]

    if need_mask:
        # Zero rows past the valid range (ragged tail / clamped duplicate block).
        c = pl.program_id(0)
        start = (c * inner_blocks + kk) * tile_rows
        rows = start + lax.broadcasted_iota(jnp.int32, (tile_rows, 1), 0)
        valid = rows < valid_rows
        xv = jnp.where(valid, xv, jnp.zeros_like(xv))
        yv = jnp.where(valid, yv, jnp.zeros_like(yv))

    # TN-style contraction over rows: packed Gram, f32 accumulation on the MXU.
    gram_ref[0] = gram_ref[0] + lax.dot_general(
        xv, yv, (((0,), (0,)), ((), ())), preferred_element_type=jnp.float32)

    # Column statistics, accumulated in f32 (inputs stay in native dtype).
    sx_ref[0] = sx_ref[0] + jnp.sum(xv, axis=0, dtype=jnp.float32, keepdims=True)
    sx2_ref[0] = sx2_ref[0] + jnp.sum(xv * xv, axis=0, dtype=jnp.float32,
                                      keepdims=True)
    sy2_ref[0] = sy2_ref[0] + jnp.sum(yv * yv, axis=0, dtype=jnp.float32,
                                      keepdims=True)


def _choose_tile_rows(n_rows: int, lane_width: int, dtype_size: int,
                      input_budget_bytes: int = 32 << 20) -> int:
    """Largest 16-aligned row tile whose double-buffered inputs fit the budget.

    VMEM model: 2 inputs x 2 pipeline buffers, each lane-padded to a multiple
    of 128 lanes -> 4 * tile_rows * round_up(lane_width, 128) * dtype_size.
    A 32 MiB budget leaves generous headroom on all generations (v7x: 64 MiB).
    """
    lanes = _round_up(lane_width, 128)
    per_row = 4 * lanes * dtype_size
    cap = max(1024, (input_budget_bytes // per_row) // 16 * 16)
    cap = min(cap, 32768)                       # keep per-step DMA sane
    return max(16, min(cap, _round_up(n_rows, 16)))


def pui_loss(x: jax.Array, y: jax.Array, lamda: float = 2.0,
             tile_rows: int | None = None, num_splits: int = 2) -> jax.Array:
    assert x.shape == y.shape, "Inputs are required to have same shape"
    assert x.ndim == 2
    if x.dtype != y.dtype:
        common = jnp.promote_types(x.dtype, y.dtype)
        x, y = x.astype(common), y.astype(common)
    n, k = x.shape
    dsize = jnp.dtype(x.dtype).itemsize

    # Free lane packing when possible: (N, K) -> (N*K/128, 128), a row-major
    # reshape (no transpose, no copy).  Packed column (s*K + j) holds original
    # column j of sub-row s; g = 128 // K original rows share a packed row.
    if k <= 128 and 128 % k == 0 and (n * k) % 128 == 0:
        g = 128 // k
    else:
        g = 1                                    # natural-layout fallback
    gk = g * k
    n_packed = n // g
    xp = x.reshape(n_packed, gk)
    yp = y.reshape(n_packed, gk)

    if tile_rows is None:
        tile_rows = _choose_tile_rows(n_packed, gk, dsize)
    tile_rows = max(16, _round_up(int(tile_rows), 16))
    tile_rows = min(tile_rows, _round_up(n_packed, 16))

    total_blocks = pl.cdiv(n_packed, tile_rows)
    num_splits = max(1, min(int(num_splits), total_blocks))
    inner_blocks = pl.cdiv(total_blocks, num_splits)
    need_mask = (num_splits * inner_blocks * tile_rows) != n_packed

    def in_map(c, kk):
        # Clamp so duplicate tail blocks (uneven split) stay in bounds; the
        # in-kernel row mask zeroes their contribution.
        return (jnp.minimum(c * inner_blocks + kk, total_blocks - 1), 0)

    kernel = functools.partial(
        _pui_partial_kernel, tile_rows=tile_rows, inner_blocks=inner_blocks,
        valid_rows=n_packed, need_mask=need_mask)

    lanes = _round_up(gk, 128)
    vmem_working = 4 * tile_rows * lanes * dsize + 4 * gk * lanes * 4
    vmem_limit = int(min(max(vmem_working + (8 << 20), 32 << 20), 48 << 20))

    cost = pl.CostEstimate(
        flops=2 * n_packed * gk * gk + 6 * n_packed * gk,
        transcendentals=0,
        bytes_accessed=2 * n_packed * gk * dsize
        + num_splits * (gk * gk + 3 * gk) * 4)

    gram_p, sx_p, sx2_p, sy2_p = pl.pallas_call(
        kernel,
        out_shape=(
            jax.ShapeDtypeStruct((num_splits, gk, gk), jnp.float32),
            jax.ShapeDtypeStruct((num_splits, 1, gk), jnp.float32),
            jax.ShapeDtypeStruct((num_splits, 1, gk), jnp.float32),
            jax.ShapeDtypeStruct((num_splits, 1, gk), jnp.float32),
        ),
        grid=(num_splits, inner_blocks),
        in_specs=[
            pl.BlockSpec((tile_rows, gk), in_map),
            pl.BlockSpec((tile_rows, gk), in_map),
        ],
        out_specs=(
            pl.BlockSpec((1, gk, gk), lambda c, kk: (c, 0, 0)),
            pl.BlockSpec((1, 1, gk), lambda c, kk: (c, 0, 0)),
            pl.BlockSpec((1, 1, gk), lambda c, kk: (c, 0, 0)),
            pl.BlockSpec((1, 1, gk), lambda c, kk: (c, 0, 0)),
        ),
        compiler_params=pltpu.CompilerParams(
            dimension_semantics=("parallel", "arbitrary"),
            vmem_limit_bytes=vmem_limit),
        cost_estimate=cost,
    )(xp, yp)

    # ---- Tiny (K x K) epilogue in plain JAX: combine the per-core partials. --
    gram = gram_p.sum(axis=0)                                   # (GK, GK)
    sx = sx_p.sum(axis=(0, 1))                                  # (GK,)
    sx2 = sx2_p.sum(axis=(0, 1))
    sy2 = sy2_p.sum(axis=(0, 1))

    # Un-pack: sum the g diagonal K x K blocks / fold (g, K) column stats.
    G = jnp.trace(gram.reshape(g, k, g, k), axis1=0, axis2=2)   # (K, K)
    sx_col = sx.reshape(g, k).sum(axis=0)
    sx2_col = sx2.reshape(g, k).sum(axis=0)
    sy2_col = sy2.reshape(g, k).sum(axis=0)

    eps = 1e-12                                                 # F.normalize eps
    pui = (G
           * (1.0 / jnp.maximum(jnp.sqrt(sx2_col), eps))[:, None]
           * (1.0 / jnp.maximum(jnp.sqrt(sy2_col), eps))[None, :])

    lse = jax.scipy.special.logsumexp(pui, axis=1)
    loss_ce = jnp.mean(lse - jnp.diag(pui))

    p = sx_col / float(n)
    # NOTE: clamp guards 0*log(0); PyTorch would return NaN for a zero column.
    p = jnp.maximum(p, 1e-30)
    loss_ne = math.log(k) + jnp.sum(p * jnp.log(p))
    return loss_ce + float(lamda) * loss_ne


def _pui_loss_ref(x, y, lamda=2.0):
    # Pure-JAX reference mirroring the PyTorch module.
    x = x.astype(jnp.float32)
    y = y.astype(jnp.float32)
    x_hat = x / jnp.maximum(jnp.linalg.norm(x, axis=0, keepdims=True), 1e-12)
    y_hat = y / jnp.maximum(jnp.linalg.norm(y, axis=0, keepdims=True), 1e-12)
    pui = jnp.matmul(x_hat.T, y_hat, precision=lax.Precision.HIGHEST)
    k = pui.shape[0]
    lse = jax.scipy.special.logsumexp(pui, axis=1)
    loss_ce = jnp.mean(lse - jnp.diag(pui))
    p = x.mean(0)
    loss_ne = math.log(k) + jnp.sum(p * jnp.log(p))
    return loss_ce + lamda * loss_ne


if __name__ == "__main__":
    root = jax.random.PRNGKey(0)
    k1, k2, k3, k4 = jax.random.split(root, 4)

    # Config 1: lane-packed fast path, multi-block grid with the 2-way split
    # (grid = (2, 2)), no masking needed.
    N1, K1 = 4096, 8
    x1 = jax.nn.softmax(jax.random.normal(k1, (N1, K1), jnp.float32), axis=-1)
    y1 = jax.nn.softmax(jax.random.normal(k2, (N1, K1), jnp.float32), axis=-1)
    out1 = jax.block_until_ready(pui_loss(x1, y1, lamda=2.0, tile_rows=64))
    ref1 = jax.block_until_ready(_pui_loss_ref(x1, y1, lamda=2.0))
    assert jnp.isfinite(out1), "loss (config 1) is not finite"
    assert jnp.allclose(out1, ref1, rtol=1e-2, atol=1e-2), (out1, ref1)

    # Config 2: packed path with an uneven split (5 blocks over 2 splits) ->
    # exercises the in-kernel mask and the clamped duplicate tail block.
    N2, K2 = 4800, 8
    x2 = jax.nn.softmax(jax.random.normal(k3, (N2, K2), jnp.float32), axis=-1)
    y2 = jax.nn.softmax(jax.random.normal(k4, (N2, K2), jnp.float32), axis=-1)
    out2 = jax.block_until_ready(pui_loss(x2, y2, lamda=2.0, tile_rows=64))
    ref2 = jax.block_until_ready(_pui_loss_ref(x2, y2, lamda=2.0))
    assert jnp.isfinite(out2), "loss (config 2) is not finite"
    assert jnp.allclose(out2, ref2, rtol=1e-2, atol=1e-2), (out2, ref2)

    # Config 3: N*K not a multiple of 128 -> natural-layout fallback with a
    # ragged-row mask (no wrapper-side padding or transpose).
    N3, K3 = 300, 8
    x3 = jax.nn.softmax(jax.random.normal(k1, (N3, K3), jnp.float32), axis=-1)
    y3 = jax.nn.softmax(jax.random.normal(k2, (N3, K3), jnp.float32), axis=-1)
    out3 = jax.block_until_ready(pui_loss(x3, y3, lamda=2.0))
    ref3 = jax.block_until_ready(_pui_loss_ref(x3, y3, lamda=2.0))
    assert jnp.isfinite(out3), "loss (config 3) is not finite"
    assert jnp.allclose(out3, ref3, rtol=1e-2, atol=1e-2), (out3, ref3)

    # Config 4: bf16 inputs fed straight to the MXU; f32 accumulation.
    xb = x1.astype(jnp.bfloat16)
    yb = y1.astype(jnp.bfloat16)
    out4 = jax.block_until_ready(pui_loss(xb, yb, lamda=2.0, tile_rows=64))
    ref4 = jax.block_until_ready(
        _pui_loss_ref(xb.astype(jnp.float32), yb.astype(jnp.float32), lamda=2.0))
    assert jnp.isfinite(out4), "loss (bf16) is not finite"
    assert jnp.allclose(out4, ref4, rtol=5e-2, atol=5e-2), (out4, ref4)

    print("KERNEL_OK")
</pallas_src>

<mosaic_0001>
module attributes {stable_mosaic.version = 11 : i64} {
  func.func @_pui_partial_kernel(%arg0: i32, %arg1: i32, %arg2: memref<64x128xf32, #tpu.memory_space<vmem>>, %arg3: memref<64x128xf32, #tpu.memory_space<vmem>>, %arg4: memref<1x128x128xf32, #tpu.memory_space<vmem>>, %arg5: memref<1x1x128xf32, #tpu.memory_space<vmem>>, %arg6: memref<1x1x128xf32, #tpu.memory_space<vmem>>, %arg7: memref<1x1x128xf32, #tpu.memory_space<vmem>>) attributes {dimension_semantics = [#tpu.dimension_semantics<parallel>, #tpu.dimension_semantics<arbitrary>], iteration_bounds = array<i64: 2, 2>, scalar_prefetch = 0 : i64, scratch_operands = 0 : i64, tpu.core_type = #tpu.core_type<tc>, window_params = [{transform_indices = @transform_0, window_bounds = array<i64: 64, 128>}, {transform_indices = @transform_1, window_bounds = array<i64: 64, 128>}, {transform_indices = @transform_2, window_bounds = array<i64: 1, 128, 128>}, {transform_indices = @transform_3, window_bounds = array<i64: 1, 1, 128>}, {transform_indices = @transform_4, window_bounds = array<i64: 1, 1, 128>}, {transform_indices = @transform_5, window_bounds = array<i64: 1, 1, 128>}]} {
    %c0_i32 = arith.constant 0 : i32
    %0 = arith.cmpi eq, %arg1, %c0_i32 : i32
    %1 = arith.extui %0 : i1 to i32
    %c0_i32_0 = arith.constant 0 : i32
    %2 = arith.cmpi ne, %1, %c0_i32_0 : i32
    scf.if %2 {
      %cst_31 = arith.constant 0.000000e+00 : f32
      %38 = vector.broadcast %cst_31 : f32 to vector<1x128x128xf32>
      %c0_32 = arith.constant 0 : index
      %c0_33 = arith.constant 0 : index
      %c0_34 = arith.constant 0 : index
      %39 = vector.load %arg4[%c0_32, %c0_33, %c0_34] : memref<1x128x128xf32, #tpu.memory_space<vmem>>, vector<1x128x128xf32>
      tpu.vector_store %arg4[%c0_32, %c0_33, %c0_34], %38 {strides = array<i32>} : memref<1x128x128xf32, #tpu.memory_space<vmem>>, vector<1x128x128xf32>,
      %cst_35 = arith.constant 0.000000e+00 : f32
      %40 = vector.broadcast %cst_35 : f32 to vector<1x1x128xf32>
      %c0_36 = arith.constant 0 : index
      %c0_37 = arith.constant 0 : index
      %c0_38 = arith.constant 0 : index
      %41 = vector.load %arg5[%c0_36, %c0_37, %c0_38] : memref<1x1x128xf32, #tpu.memory_space<vmem>>, vector<1x1x128xf32>
      tpu.vector_store %arg5[%c0_36, %c0_37, %c0_38], %40 {strides = array<i32>} : memref<1x1x128xf32, #tpu.memory_space<vmem>>, vector<1x1x128xf32>,
      %cst_39 = arith.constant 0.000000e+00 : f32
      %42 = vector.broadcast %cst_39 : f32 to vector<1x1x128xf32>
      %c0_40 = arith.constant 0 : index
      %c0_41 = arith.constant 0 : index
      %c0_42 = arith.constant 0 : index
      %43 = vector.load %arg6[%c0_40, %c0_41, %c0_42] : memref<1x1x128xf32, #tpu.memory_space<vmem>>, vector<1x1x128xf32>
      tpu.vector_store %arg6[%c0_40, %c0_41, %c0_42], %42 {strides = array<i32>} : memref<1x1x128xf32, #tpu.memory_space<vmem>>, vector<1x1x128xf32>,
      %cst_43 = arith.constant 0.000000e+00 : f32
      %44 = vector.broadcast %cst_43 : f32 to vector<1x1x128xf32>
      %c0_44 = arith.constant 0 : index
      %c0_45 = arith.constant 0 : index
      %c0_46 = arith.constant 0 : index
      %45 = vector.load %arg7[%c0_44, %c0_45, %c0_46] : memref<1x1x128xf32, #tpu.memory_space<vmem>>, vector<1x1x128xf32>
      tpu.vector_store %arg7[%c0_44, %c0_45, %c0_46], %44 {strides = array<i32>} : memref<1x1x128xf32, #tpu.memory_space<vmem>>, vector<1x1x128xf32>,
    } else {
    }
    %c0 = arith.constant 0 : index
    %c0_1 = arith.constant 0 : index
    %3 = vector.load %arg2[%c0, %c0_1] : memref<64x128xf32, #tpu.memory_space<vmem>>, vector<64x128xf32>
    %c0_2 = arith.constant 0 : index
    %c0_3 = arith.constant 0 : index
    %4 = vector.load %arg3[%c0_2, %c0_3] : memref<64x128xf32, #tpu.memory_space<vmem>>, vector<64x128xf32>
    %c0_4 = arith.constant 0 : index
    %c0_5 = arith.constant 0 : index
    %c0_6 = arith.constant 0 : index
    %5 = vector.load %arg4[%c0_4, %c0_5, %c0_6] : memref<1x128x128xf32, #tpu.memory_space<vmem>>, vector<1x128x128xf32>
    %6 = vector.shape_cast %5 : vector<1x128x128xf32> to vector<128x128xf32>
    %cst = arith.constant dense<0.000000e+00> : vector<128x128xf32>
    %7 = tpu.matmul %3, %4, %cst {dimension_numbers = #tpu.dot_dimension_numbers<[0], [0], [1], [1], [0, 1, 1, 1], [], []>} : vector<64x128xf32>, vector<64x128xf32>, vector<128x128xf32> -> vector<128x128xf32>
    %8 = arith.addf %6, %7 : vector<128x128xf32>
    %c0_7 = arith.constant 0 : index
    %c0_8 = arith.constant 0 : index
    %c0_9 = arith.constant 0 : index
    %9 = vector.load %arg4[%c0_7, %c0_8, %c0_9] : memref<1x128x128xf32, #tpu.memory_space<vmem>>, vector<1x128x128xf32>
    %10 = vector.shape_cast %9 : vector<1x128x128xf32> to vector<128x128xf32>
    %11 = vector.shape_cast %8 : vector<128x128xf32> to vector<1x128x128xf32>
    tpu.vector_store %arg4[%c0_7, %c0_8, %c0_9], %11 {strides = array<i32>} : memref<1x128x128xf32, #tpu.memory_space<vmem>>, vector<1x128x128xf32>,
    %c0_10 = arith.constant 0 : index
    %c0_11 = arith.constant 0 : index
    %c0_12 = arith.constant 0 : index
    %12 = vector.load %arg5[%c0_10, %c0_11, %c0_12] : memref<1x1x128xf32, #tpu.memory_space<vmem>>, vector<1x1x128xf32>
    %13 = vector.shape_cast %12 : vector<1x1x128xf32> to vector<1x128xf32>
    %cst_13 = arith.constant dense<0.000000e+00> : vector<128xf32>
    %14 = vector.multi_reduction <add>, %3, %cst_13 [0] : vector<64x128xf32> to vector<128xf32>
    %15 = vector.shape_cast %14 : vector<128xf32> to vector<1x128xf32>
    %16 = arith.addf %13, %15 : vector<1x128xf32>
    %c0_14 = arith.constant 0 : index
    %c0_15 = arith.constant 0 : index
    %c0_16 = arith.constant 0 : index
    %17 = vector.load %arg5[%c0_14, %c0_15, %c0_16] : memref<1x1x128xf32, #tpu.memory_space<vmem>>, vector<1x1x128xf32>
    %18 = vector.shape_cast %17 : vector<1x1x128xf32> to vector<1x128xf32>
    %19 = vector.shape_cast %16 : vector<1x128xf32> to vector<1x1x128xf32>
    tpu.vector_store %arg5[%c0_14, %c0_15, %c0_16], %19 {strides = array<i32>} : memref<1x1x128xf32, #tpu.memory_space<vmem>>, vector<1x1x128xf32>,
    %c0_17 = arith.constant 0 : index
    %c0_18 = arith.constant 0 : index
    %c0_19 = arith.constant 0 : index
    %20 = vector.load %arg6[%c0_17, %c0_18, %c0_19] : memref<1x1x128xf32, #tpu.memory_space<vmem>>, vector<1x1x128xf32>
    %21 = vector.shape_cast %20 : vector<1x1x128xf32> to vector<1x128xf32>
    %22 = arith.mulf %3, %3 : vector<64x128xf32>
    %cst_20 = arith.constant dense<0.000000e+00> : vector<128xf32>
    %23 = vector.multi_reduction <add>, %22, %cst_20 [0] : vector<64x128xf32> to vector<128xf32>
    %24 = vector.shape_cast %23 : vector<128xf32> to vector<1x128xf32>
    %25 = arith.addf %21, %24 : vector<1x128xf32>
    %c0_21 = arith.constant 0 : index
    %c0_22 = arith.constant 0 : index
    %c0_23 = arith.constant 0 : index
    %26 = vector.load %arg6[%c0_21, %c0_22, %c0_23] : memref<1x1x128xf32, #tpu.memory_space<vmem>>, vector<1x1x128xf32>
    %27 = vector.shape_cast %26 : vector<1x1x128xf32> to vector<1x128xf32>
    %28 = vector.shape_cast %25 : vector<1x128xf32> to vector<1x1x128xf32>
    tpu.vector_store %arg6[%c0_21, %c0_22, %c0_23], %28 {strides = array<i32>} : memref<1x1x128xf32, #tpu.memory_space<vmem>>, vector<1x1x128xf32>,
    %c0_24 = arith.constant 0 : index
    %c0_25 = arith.constant 0 : index
    %c0_26 = arith.constant 0 : index
    %29 = vector.load %arg7[%c0_24, %c0_25, %c0_26] : memref<1x1x128xf32, #tpu.memory_space<vmem>>, vector<1x1x128xf32>
    %30 = vector.shape_cast %29 : vector<1x1x128xf32> to vector<1x128xf32>
    %31 = arith.mulf %4, %4 : vector<64x128xf32>
    %cst_27 = arith.constant dense<0.000000e+00> : vector<128xf32>
    %32 = vector.multi_reduction <add>, %31, %cst_27 [0] : vector<64x128xf32> to vector<128xf32>
    %33 = vector.shape_cast %32 : vector<128xf32> to vector<1x128xf32>
    %34 = arith.addf %30, %33 : vector<1x128xf32>
    %c0_28 = arith.constant 0 : index
    %c0_29 = arith.constant 0 : index
    %c0_30 = arith.constant 0 : index
    %35 = vector.load %arg7[%c0_28, %c0_29, %c0_30] : memref<1x1x128xf32, #tpu.memory_space<vmem>>, vector<1x1x128xf32>
    %36 = vector.shape_cast %35 : vector<1x1x128xf32> to vector<1x128xf32>
    %37 = vector.shape_cast %34 : vector<1x128xf32> to vector<1x1x128xf32>
    tpu.vector_store %arg7[%c0_28, %c0_29, %c0_30], %37 {strides = array<i32>} : memref<1x1x128xf32, #tpu.memory_space<vmem>>, vector<1x1x128xf32>,
    return
  }
  func.func @transform_0(%arg0: i32, %arg1: i32) -> (i32, i32) {
    %c2_i32 = arith.constant 2 : i32
    %0 = arith.muli %arg0, %c2_i32 : i32
    %1 = arith.addi %0, %arg1 : i32
    %c3_i32 = arith.constant 3 : i32
    %2 = arith.minsi %1, %c3_i32 : i32
    %c0_i32 = arith.constant 0 : i32
    %c0_i32_0 = arith.constant 0 : i32
    return %2, %c0_i32 : i32, i32
  }
  func.func @transform_1(%arg0: i32, %arg1: i32) -> (i32, i32) {
    %c2_i32 = arith.constant 2 : i32
    %0 = arith.muli %arg0, %c2_i32 : i32
    %1 = arith.addi %0, %arg1 : i32
    %c3_i32 = arith.constant 3 : i32
    %2 = arith.minsi %1, %c3_i32 : i32
    %c0_i32 = arith.constant 0 : i32
    %c0_i32_0 = arith.constant 0 : i32
    return %2, %c0_i32 : i32, i32
  }
  func.func @transform_2(%arg0: i32, %arg1: i32) -> (i32, i32, i32) {
    %c0_i32 = arith.constant 0 : i32
    %c0_i32_0 = arith.constant 0 : i32
    %c0_i32_1 = arith.constant 0 : i32
    return %arg0, %c0_i32, %c0_i32_0 : i32, i32, i32
  }
  func.func @transform_3(%arg0: i32, %arg1: i32) -> (i32, i32, i32) {
    %c0_i32 = arith.constant 0 : i32
    %c0_i32_0 = arith.constant 0 : i32
    %c0_i32_1 = arith.constant 0 : i32
    return %arg0, %c0_i32, %c0_i32_0 : i32, i32, i32
  }
  func.func @transform_4(%arg0: i32, %arg1: i32) -> (i32, i32, i32) {
    %c0_i32 = arith.constant 0 : i32
    %c0_i32_0 = arith.constant 0 : i32
    %c0_i32_1 = arith.constant 0 : i32
    return %arg0, %c0_i32, %c0_i32_0 : i32, i32, i32
  }
  func.func @transform_5(%arg0: i32, %arg1: i32) -> (i32, i32, i32) {
    %c0_i32 = arith.constant 0 : i32
    %c0_i32_0 = arith.constant 0 : i32
    %c0_i32_1 = arith.constant 0 : i32
    return %arg0, %c0_i32, %c0_i32_0 : i32, i32, i32
  }
}

</mosaic_0001>

<llo_original>
// kernel: tpu_custom_call.1
$region0: #{tpu_custom_call.1}
  #allocation0 [shape = 'u32[]', space=smem, size = 0x4, offset = 0x4, fixed_abs, tag = 'smem constant byte address 0x4 - core index']
  #allocation1 [shape = 'u32[144,128]{1,0:T(1,128)}', space=vmem, size = 0x12000, scoped, tag = 'internal scratch']
  %s0 = inlined_call_operand.hbm [shape: f32[256,128], index: 0, kind: input, shape index: {}]
  %s1 = inlined_call_operand.hbm [shape: f32[256,128], index: 1, kind: input, shape index: {}]
  %s2 = inlined_call_operand.hbm [shape: f32[2,128,128], index: 2, kind: output, shape index: {0}]
  %s3 = inlined_call_operand.hbm [shape: f32[2,1,128], index: 3, kind: output, shape index: {1}]
  %s4 = inlined_call_operand.hbm [shape: f32[2,1,128], index: 4, kind: output, shape index: {2}]
  %s5 = inlined_call_operand.hbm [shape: f32[2,1,128], index: 5, kind: output, shape index: {3}]
  %6 = xla_tuple %s2, %s3, %s4, %s5
  %s7 = sld [smem:[#allocation0]]
  $region77: #{tpu_custom_call.1} parent=0
    _
  %s9 = ssub.s32 1, %s7
  %s10 = scalar_select 0, %s9, %s7
  $region1: #{tpu_custom_call.1} parent=0
    #allocation2 [shape = 'u8[65536]{0}', space=vmem, size = 0x10000, scoped, tag = 'input window, operand 0']
    #allocation3 [shape = 's32[2]{0}', space=sflag, size = 0x8, scoped, tag = 'scoped memory for tpu_custom_call.1']
    #allocation4 [shape = 's32[2]{0}', space=sflag, size = 0x8, scoped, tag = 'scoped memory for tpu_custom_call.1']
    #allocation5 [shape = 'u8[65536]{0}', space=vmem, size = 0x10000, scoped, tag = 'input window, operand 1']
    #allocation6 [shape = 's32[2]{0}', space=sflag, size = 0x8, scoped, tag = 'scoped memory for tpu_custom_call.1']
    #allocation7 [shape = 'u8[131072]{0}', space=vmem, size = 0x20000, scoped, tag = 'output window, operand 0']
    #allocation8 [shape = 'u8[1024]{0}', space=vmem, size = 0x400, scoped, tag = 'output window, operand 1']
    #allocation9 [shape = 's32[2]{0}', space=sflag, size = 0x8, scoped, tag = 'scoped memory for tpu_custom_call.1']
    #allocation10 [shape = 'u8[1024]{0}', space=vmem, size = 0x400, scoped, tag = 'output window, operand 2']
    #allocation11 [shape = 'u8[1024]{0}', space=vmem, size = 0x400, scoped, tag = 'output window, operand 3']
    #allocation12 [shape = 's32[2]{0}', space=sflag, size = 0x8, scoped, tag = 'scoped memory for tpu_custom_call.1']
    %11 = vsyncpa [#allocation3], 0
    %s12 = scalar_lea.sflag [#allocation3], 1
    %13 = vsyncpa %s12, 0
    %14 = vsyncpa [#allocation6], 0
    %s15 = scalar_lea.sflag [#allocation6], 1
    %16 = vsyncpa %s15, 0
    %17 = vsyncpa [#allocation4], 0
    %s18 = scalar_lea.sflag [#allocation4], 1
    %19 = vsyncpa %s18, 0
    %20 = vsyncpa [#allocation9], 0
    %s21 = scalar_lea.sflag [#allocation9], 1
    %22 = vsyncpa %s21, 0
    %23 = vsyncpa [#allocation12], 0
    %s24 = scalar_lea.sflag [#allocation12], 1
    %25 = vsyncpa %s24, 0
    loop: start=0, step=1, limit=6
    $region2: #{tpu_custom_call.1} parent=1 // loop_pre_header
      _
    $region3: #{tpu_custom_call.1} parent=1 // loop_header
      %s27 = sphi 0, %s31
      %p28 = scmp.ge.s32.totalorder %s27, 6
      %s34 = sphi 0, %s46
      %s35 = sphi 0, %s42
      %s36 = sphi 0, %s34
      %s37 = sphi 0, %s35
      %s38 = sphi 0, %s36
      %s39 = sphi 0, %s37
      %s57 = sphi 0, %s59
      %s60 = sphi 0, %s57
      %s61 = sphi 0, %s60
      %s77 = sphi 0, %s61
      %s91 = sphi 0, %s93
      %s94 = sphi 0, %s91
      %s95 = sphi 0, %s94
      %s111 = sphi 0, %s95
      %s117 = sphi 0, %s119
      %s120 = sphi 0, %s117
      %s121 = sphi 0, %s120
      %s137 = sphi 0, %s121
      %s143 = sphi 0, %s145
      %s146 = sphi 0, %s143
      %s147 = sphi 0, %s146
      %s163 = sphi 0, %s147
      %s169 = sphi 0, %s171
      %s172 = sphi 0, %s169
      %s173 = sphi 0, %s172
      %s189 = sphi 0, %s173
      %s195 = sphi 0, %s197
      %s198 = sphi 0, %s195
      %s199 = sphi 0, %s198
      %s215 = sphi 0, %s199
    $region4: #{tpu_custom_call.1} parent=1 // loop_header_branch
      %30 = sbr.rel (%p28) target = $region8
    $region5: #{tpu_custom_call.1} parent=1 // loop_body
      %s32 = ssub.s32 %s27, 1
      %s33 = ssub.s32 %s27, 2
      %s40 = sadd.s32 1, %s35
      %p41 = scmp.ge.s32.totalorder %s40, 2
      %s42 = scalar_select %p41, 0, %s40
      %s43 = sadd.s32 1, %s34
      %s44 = scalar_select %p41, %s43, %s34
      %p45 = scmp.ge.s32.totalorder %s44, 2
      %s46 = scalar_select %p45, 0, %s44
      %s47 = smul.u32 %s34, 2
      %s48 = sadd.s32 %s47, %s35
      %p49 = scmp.lt.s32.totalorder %s48, 3
      %s50 = scalar_select %p49, %s48, 3
      %s51 = smul.u32 %s46, 2
      %s52 = sadd.s32 %s51, %s42
      %p53 = scmp.lt.s32.totalorder %s52, 3
      %s54 = scalar_select %p53, %s52, 3
      %s55 = ssub.s32 %s50, %s54
      %p56 = scmp.eq.s32.totalorder %s55, 0
      %s58 = sadd.s32 %s57, 1
      %s59 = scalar_select %p56, %s57, %s58
      %p62 = pneg %p56
      %p63 = scmp.eq.s32.totalorder %s27, 3
      %p64 = por %p62, %p63
      %p65 = scmp.ne.s32.totalorder %s57, %s60
      %p66 = scmp.eq.s32.totalorder %s27, 0
      %p67 = por %p65, %p66
      %p68 = scmp.ne.s32.totalorder %s57, %s60
      %p69 = scmp.eq.s32.totalorder %s32, 3
      %p70 = por %p68, %p69
      %p71 = scmp.ne.s32.totalorder %s60, %s61
      %p72 = scmp.eq.s32.totalorder %s32, 0
      %p73 = por %p71, %p72
      %p74 = scmp.ne.s32.totalorder %s60, %s61
      %p75 = scmp.eq.s32.totalorder %s33, 3
      %p76 = por %p74, %p75
      %p78 = scmp.ne.s32.totalorder %s61, %s77
      %p79 = scmp.eq.s32.totalorder %s33, 0
      %p80 = por %p78, %p79
      %s81 = smul.u32 %s34, 2
      %s82 = sadd.s32 %s81, %s35
      %p83 = scmp.lt.s32.totalorder %s82, 3
      %s84 = scalar_select %p83, %s82, 3
      %s85 = smul.u32 %s46, 2
      %s86 = sadd.s32 %s85, %s42
      %p87 = scmp.lt.s32.totalorder %s86, 3
      %s88 = scalar_select %p87, %s86, 3
      %s89 = ssub.s32 %s84, %s88
      %p90 = scmp.eq.s32.totalorder %s89, 0
      %s92 = sadd.s32 %s91, 1
      %s93 = scalar_select %p90, %s91, %s92
      %p96 = pneg %p90
      %p97 = scmp.eq.s32.totalorder %s27, 3
      %p98 = por %p96, %p97
      %p99 = scmp.ne.s32.totalorder %s91, %s94
      %p100 = scmp.eq.s32.totalorder %s27, 0
      %p101 = por %p99, %p100
      %p102 = scmp.ne.s32.totalorder %s91, %s94
      %p103 = scmp.eq.s32.totalorder %s32, 3
      %p104 = por %p102, %p103
      %p105 = scmp.ne.s32.totalorder %s94, %s95
      %p106 = scmp.eq.s32.totalorder %s32, 0
      %p107 = por %p105, %p106
      %p108 = scmp.ne.s32.totalorder %s94, %s95
      %p109 = scmp.eq.s32.totalorder %s33, 3
      %p110 = por %p108, %p109
      %p112 = scmp.ne.s32.totalorder %s95, %s111
      %p113 = scmp.eq.s32.totalorder %s33, 0
      %p114 = por %p112, %p113
      %s115 = ssub.s32 %s34, %s46
      %p116 = scmp.eq.s32.totalorder %s115, 0
      %s118 = sadd.s32 %s117, 1
      %s119 = scalar_select %p116, %s117, %s118
      %p122 = pneg %p116
      %p123 = scmp.eq.s32.totalorder %s27, 3
      %p124 = por %p122, %p123
      %p125 = scmp.ne.s32.totalorder %s117, %s120
      %p126 = scmp.eq.s32.totalorder %s27, 0
      %p127 = por %p125, %p126
      %p128 = scmp.ne.s32.totalorder %s117, %s120
      %p129 = scmp.eq.s32.totalorder %s32, 3
      %p130 = por %p128, %p129
      %p131 = scmp.ne.s32.totalorder %s120, %s121
      %p132 = scmp.eq.s32.totalorder %s32, 0
      %p133 = por %p131, %p132
      %p134 = scmp.ne.s32.totalorder %s120, %s121
      %p135 = scmp.eq.s32.totalorder %s33, 3
      %p136 = por %p134, %p135
      %p138 = scmp.ne.s32.totalorder %s121, %s137
      %p139 = scmp.eq.s32.totalorder %s33, 0
      %p140 = por %p138, %p139
      %s141 = ssub.s32 %s34, %s46
      %p142 = scmp.eq.s32.totalorder %s141, 0
      %s144 = sadd.s32 %s143, 1
      %s145 = scalar_select %p142, %s143, %s144
      %p148 = pneg %p142
      %p149 = scmp.eq.s32.totalorder %s27, 3
      %p150 = por %p148, %p149
      %p151 = scmp.ne.s32.totalorder %s143, %s146
      %p152 = scmp.eq.s32.totalorder %s27, 0
      %p153 = por %p151, %p152
      %p154 = scmp.ne.s32.totalorder %s143, %s146
      %p155 = scmp.eq.s32.totalorder %s32, 3
      %p156 = por %p154, %p155
      %p157 = scmp.ne.s32.totalorder %s146, %s147
      %p158 = scmp.eq.s32.totalorder %s32, 0
      %p159 = por %p157, %p158
      %p160 = scmp.ne.s32.totalorder %s146, %s147
      %p161 = scmp.eq.s32.totalorder %s33, 3
      %p162 = por %p160, %p161
      %p164 = scmp.ne.s32.totalorder %s147, %s163
      %p165 = scmp.eq.s32.totalorder %s33, 0
      %p166 = por %p164, %p165
      %s167 = ssub.s32 %s34, %s46
      %p168 = scmp.eq.s32.totalorder %s167, 0
      %s170 = sadd.s32 %s169, 1
      %s171 = scalar_select %p168, %s169, %s170
      %p174 = pneg %p168
      %p175 = scmp.eq.s32.totalorder %s27, 3
      %p176 = por %p174, %p175
      %p177 = scmp.ne.s32.totalorder %s169, %s172
      %p178 = scmp.eq.s32.totalorder %s27, 0
      %p179 = por %p177, %p178
      %p180 = scmp.ne.s32.totalorder %s169, %s172
      %p181 = scmp.eq.s32.totalorder %s32, 3
      %p182 = por %p180, %p181
      %p183 = scmp.ne.s32.totalorder %s172, %s173
      %p184 = scmp.eq.s32.totalorder %s32, 0
      %p185 = por %p183, %p184
      %p186 = scmp.ne.s32.totalorder %s172, %s173
      %p187 = scmp.eq.s32.totalorder %s33, 3
      %p188 = por %p186, %p187
      %p190 = scmp.ne.s32.totalorder %s173, %s189
      %p191 = scmp.eq.s32.totalorder %s33, 0
      %p192 = por %p190, %p191
      %s193 = ssub.s32 %s34, %s46
      %p194 = scmp.eq.s32.totalorder %s193, 0
      %s196 = sadd.s32 %s195, 1
      %s197 = scalar_select %p194, %s195, %s196
      %p200 = pneg %p194
      %p201 = scmp.eq.s32.totalorder %s27, 3
      %p202 = por %p200, %p201
      %p203 = scmp.ne.s32.totalorder %s195, %s198
      %p204 = scmp.eq.s32.totalorder %s27, 0
      %p205 = por %p203, %p204
      %p206 = scmp.ne.s32.totalorder %s195, %s198
      %p207 = scmp.eq.s32.totalorder %s32, 3
      %p208 = por %p206, %p207
      %p209 = scmp.ne.s32.totalorder %s198, %s199
      %p210 = scmp.eq.s32.totalorder %s32, 0
      %p211 = por %p209, %p210
      %p212 = scmp.ne.s32.totalorder %s198, %s199
      %p213 = scmp.eq.s32.totalorder %s33, 3
      %p214 = por %p212, %p213
      %p216 = scmp.ne.s32.totalorder %s199, %s215
      %p217 = scmp.eq.s32.totalorder %s33, 0
      %p218 = por %p216, %p217
      %p219 = scmp.le.s32.totalorder 1, %s27
      %p220 = scmp.lt.s32.totalorder %s27, 5
      %p221 = pnand %p219, %p220
      %p222 = pneg %p221
      // Predicated region
      $region9: #{tpu_custom_call.1} parent=5 // pred_check
        _
      $region10: #{tpu_custom_call.1} parent=5 // pred_check_branch
        %224 = sbr.rel (%p221) target = $region12
      $region11: #{tpu_custom_call.1} parent=5 // pred_region
        %s225 = ssub.s32 %s27, 1
      $region12: #{tpu_custom_call.1} parent=5 // pred_fallthru
        _
      %p226 = scmp.lt.s32.totalorder %s27, 4
      // Predicated region
      $region13: #{tpu_custom_call.1} parent=5 // pred_check
        %p227 = pneg %p226
      $region14: #{tpu_custom_call.1} parent=5 // pred_check_branch
        %229 = sbr.rel (%p227) target = $region16
      $region15: #{tpu_custom_call.1} parent=5 // pred_region
        // Predicated region
        $region17: #{tpu_custom_call.1} parent=15 // pred_check
          %p230 = pneg %p67
        $region18: #{tpu_custom_call.1} parent=15 // pred_check_branch
          %232 = sbr.rel (%p230) target = $region20
        $region19: #{tpu_custom_call.1} parent=15 // pred_region
          %s233 = sand.u32 %s57, 1
          %s234 = scalar_lea.sflag [#allocation3], %s233
          %s235 = sand.u32 %s57, 1
          %s236 = smul.addr %s235, 64
          %s237 = scalar_lea.vmem [#allocation2], %s236
          %s238 = smul.u32 %s34, 2
          %s239 = sadd.s32 %s238, %s35
          %p240 = scmp.lt.s32.totalorder %s239, 3
          %s241 = scalar_select %p240, %s239, 3
          %s242 = smul.u32 8, %s241
          %s244 = ssub.s32 1024, 1024
          %245 = vsyncadd %s234, %s244
          %s246 = smul.addr %s242, 128
          %s247 = scalar_lea.hbm %s0, %s246
          %s248 = sshll.u32 %s237, 4
          %s249 = int_to_ptr.vmem [resolvable:$true] %s248
          %254 = dma.hbm_to_vmem [thread:$0]  %s247, 1024, %s249, %s234, 128, 128, 8
        $region20: #{tpu_custom_call.1} parent=15 // pred_fallthru
          _
        // Predicated region
        $region21: #{tpu_custom_call.1} parent=15 // pred_check
          %p255 = pneg %p101
        $region22: #{tpu_custom_call.1} parent=15 // pred_check_branch
          %257 = sbr.rel (%p255) target = $region24
        $region23: #{tpu_custom_call.1} parent=15 // pred_region
          %s258 = sand.u32 %s91, 1
          %s259 = scalar_lea.sflag [#allocation6], %s258
          %s260 = sand.u32 %s91, 1
          %s261 = smul.addr %s260, 64
          %s262 = scalar_lea.vmem [#allocation5], %s261
          %s263 = smul.u32 %s34, 2
          %s264 = sadd.s32 %s263, %s35
          %p265 = scmp.lt.s32.totalorder %s264, 3
          %s266 = scalar_select %p265, %s264, 3
          %s267 = smul.u32 8, %s266
          %s269 = ssub.s32 1024, 1024
          %270 = vsyncadd %s259, %s269
          %s271 = smul.addr %s267, 128
          %s272 = scalar_lea.hbm %s1, %s271
          %s273 = sshll.u32 %s262, 4
          %s274 = int_to_ptr.vmem [resolvable:$true] %s273
          %279 = dma.hbm_to_vmem [thread:$0]  %s272, 1024, %s274, %s259, 128, 128, 8
        $region24: #{tpu_custom_call.1} parent=15 // pred_fallthru
          _
      $region16: #{tpu_custom_call.1} parent=5 // pred_fallthru
        _
      %p280 = scmp.le.s32.totalorder 1, %s27
      %p281 = scmp.lt.s32.totalorder %s27, 5
      %p282 = pnand %p280, %p281
      %p283 = pneg %p282
      // Predicated region
      $region25: #{tpu_custom_call.1} parent=5 // pred_check
        _
      $region26: #{tpu_custom_call.1} parent=5 // pred_check_branch
        %285 = sbr.rel (%p282) target = $region28
      $region27: #{tpu_custom_call.1} parent=5 // pred_region
        %s286 = ssub.s32 %s27, 1
        %s287 = sand.u32 %s60, 1
        %s288 = scalar_lea.sflag [#allocation3], %s287
        %s289 = sand.u32 %s60, 1
        %s290 = smul.addr %s289, 64
        %s291 = scalar_lea.vmem [#allocation2], %s290
        // Predicated region
        $region29: #{tpu_custom_call.1} parent=27 // pred_check
          %p292 = pneg %p73
        $region30: #{tpu_custom_call.1} parent=27 // pred_check_branch
          %294 = sbr.rel (%p292) target = $region32
        $region31: #{tpu_custom_call.1} parent=27 // pred_region
          %295 = dma.done %s288, 1024
        $region32: #{tpu_custom_call.1} parent=27 // pred_fallthru
          _
        %s296 = sand.u32 %s94, 1
        %s297 = scalar_lea.sflag [#allocation6], %s296
        %s298 = sand.u32 %s94, 1
        %s299 = smul.addr %s298, 64
        %s300 = scalar_lea.vmem [#allocation5], %s299
        // Predicated region
        $region33: #{tpu_custom_call.1} parent=27 // pred_check
          %p301 = pneg %p107
        $region34: #{tpu_custom_call.1} parent=27 // pred_check_branch
          %303 = sbr.rel (%p301) target = $region36
        $region35: #{tpu_custom_call.1} parent=27 // pred_region
          %304 = dma.done %s297, 1024
        $region36: #{tpu_custom_call.1} parent=27 // pred_fallthru
          _
        %s305 = sand.u32 %s60, 1
        %s306 = scalar_lea.sflag [#allocation3], %s305
        %s307 = sand.u32 %s60, 1
        %s308 = smul.addr %s307, 64
        %s309 = scalar_lea.vmem [#allocation2], %s308
        %p310 = pneg %p73
        %p311 = pneg %p70
        %s312 = sand.u32 %s94, 1
        %s313 = scalar_lea.sflag [#allocation6], %s312
        %s314 = sand.u32 %s94, 1
        %s315 = smul.addr %s314, 64
        %s316 = scalar_lea.vmem [#allocation5], %s315
        %p317 = pneg %p107
        %p318 = pneg %p104
        %p319 = pneg %p133
        %p320 = pneg %p130
        %s321 = sand.u32 %s120, 1
        %s322 = scalar_lea.sflag [#allocation4], %s321
        %s323 = sand.u32 %s120, 1
        %s324 = smul.addr %s323, 128
        %s325 = scalar_lea.vmem [#allocation7], %s324
        %p326 = pneg %p159
        %p327 = pneg %p156
        %s328 = sand.u32 %s32, 1
        %s329 = scalar_lea.sflag [#allocation9], %s328
        %s330 = sand.u32 %s146, 1
        %s331 = scalar_lea.vmem [#allocation8], %s330
        %p332 = pneg %p185
        %p333 = pneg %p182
        %s334 = sand.u32 %s32, 1
        %s335 = scalar_lea.sflag [#allocation9], %s334
        %s336 = sand.u32 %s172, 1
        %s337 = scalar_lea.vmem [#allocation10], %s336
        %p338 = pneg %p211
        %p339 = pneg %p208
        %s340 = sand.u32 %s198, 1
        %s341 = scalar_lea.sflag [#allocation12], %s340
        %s342 = sand.u32 %s198, 1
        %s343 = scalar_lea.vmem [#allocation11], %s342
        %s344 = smul.u32 %s36, 2
        %s345 = sadd.s32 %s344, %s37
        %p346 = scmp.lt.s32.totalorder %s345, 3
        %s347 = scalar_select %p346, %s345, 3
        %s348 = smul.u32 8, %s347
        %s349 = smul.u32 %s36, 2
        %s350 = sadd.s32 %s349, %s37
        %p351 = scmp.lt.s32.totalorder %s350, 3
        %s352 = scalar_select %p351, %s350, 3
        %s353 = smul.u32 8, %s352
        %p354 = scmp.eq.s32.totalorder %s37, 0
        // Predicated region
        $region37: #{tpu_custom_call.1} parent=27 // pred_check
          %p355 = pneg %p354
        $region38: #{tpu_custom_call.1} parent=27 // pred_check_branch
          %357 = sbr.rel (%p355) target = $region40
        $region39: #{tpu_custom_call.1} parent=27 // pred_region
          %358 = vst [vmem:[%s325] sm:$0xff] 0.0
          %359 = vst [vmem:[%s325 + $0x8] sm:$0xff] 0.0
          %360 = vst [vmem:[%s325 + $0x10] sm:$0xff] 0.0
          %361 = vst [vmem:[%s325 + $0x18] sm:$0xff] 0.0
          %362 = vst [vmem:[%s325 + $0x20] sm:$0xff] 0.0
          %363 = vst [vmem:[%s325 + $0x28] sm:$0xff] 0.0
          %364 = vst [vmem:[%s325 + $0x30] sm:$0xff] 0.0
          %365 = vst [vmem:[%s325 + $0x38] sm:$0xff] 0.0
          %366 = vst [vmem:[%s325 + $0x40] sm:$0xff] 0.0
          %367 = vst [vmem:[%s325 + $0x48] sm:$0xff] 0.0
          %368 = vst [vmem:[%s325 + $0x50] sm:$0xff] 0.0
          %369 = vst [vmem:[%s325 + $0x58] sm:$0xff] 0.0
          %370 = vst [vmem:[%s325 + $0x60] sm:$0xff] 0.0
          %371 = vst [vmem:[%s325 + $0x68] sm:$0xff] 0.0
          %372 = vst [vmem:[%s325 + $0x70] sm:$0xff] 0.0
          %373 = vst [vmem:[%s325 + $0x78] sm:$0xff] 0.0
          %374 = vst [vmem:[%s331] sm:$0x1] 0.0
          %375 = vst [vmem:[%s337] sm:$0x1] 0.0
          %376 = vst [vmem:[%s343] sm:$0x1] 0.0
        $region40: #{tpu_custom_call.1} parent=27 // pred_fallthru
          _
        %v377 = vld [vmem:[%s291] sm:$0xff]
        %v378 = vld [vmem:[%s291 + $0x8] sm:$0xff]
        %v379 = vld [vmem:[%s291 + $0x10] sm:$0xff]
        %v380 = vld [vmem:[%s291 + $0x18] sm:$0xff]
        %v381 = vld [vmem:[%s291 + $0x20] sm:$0xff]
        %v382 = vld [vmem:[%s291 + $0x28] sm:$0xff]
        %v383 = vld [vmem:[%s291 + $0x30] sm:$0xff]
        %v384 = vld [vmem:[%s291 + $0x38] sm:$0xff]
        %v385 = vld [vmem:[%s300] sm:$0xff]
        %v386 = vld [vmem:[%s300 + $0x8] sm:$0xff]
        %v387 = vld [vmem:[%s300 + $0x10] sm:$0xff]
        %v388 = vld [vmem:[%s300 + $0x18] sm:$0xff]
        %v389 = vld [vmem:[%s300 + $0x20] sm:$0xff]
        %v390 = vld [vmem:[%s300 + $0x28] sm:$0xff]
        %v391 = vld [vmem:[%s300 + $0x30] sm:$0xff]
        %v392 = vld [vmem:[%s300 + $0x38] sm:$0xff]
        %v393 = vld [vmem:[%s325] sm:$0xff]
        %v394 = vld [vmem:[%s325 + $0x8] sm:$0xff]
        %v395 = vld [vmem:[%s325 + $0x10] sm:$0xff]
        %v396 = vld [vmem:[%s325 + $0x18] sm:$0xff]
        %v397 = vld [vmem:[%s325 + $0x20] sm:$0xff]
        %v398 = vld [vmem:[%s325 + $0x28] sm:$0xff]
        %v399 = vld [vmem:[%s325 + $0x30] sm:$0xff]
        %v400 = vld [vmem:[%s325 + $0x38] sm:$0xff]
        %v401 = vld [vmem:[%s325 + $0x40] sm:$0xff]
        %v402 = vld [vmem:[%s325 + $0x48] sm:$0xff]
        %v403 = vld [vmem:[%s325 + $0x50] sm:$0xff]
        %v404 = vld [vmem:[%s325 + $0x58] sm:$0xff]
        %v405 = vld [vmem:[%s325 + $0x60] sm:$0xff]
        %v406 = vld [vmem:[%s325 + $0x68] sm:$0xff]
        %v407 = vld [vmem:[%s325 + $0x70] sm:$0xff]
        %v408 = vld [vmem:[%s325 + $0x78] sm:$0xff]
        %409 = vxpose.xlu0.b32.start [1/16] %v377, 128
        %410 = vxpose.xlu0.b32.cont [2/16] %v378, 128
        %411 = vxpose.xlu0.b32.cont [3/16] %v379, 128
        %412 = vxpose.xlu0.b32.cont [4/16] %v380, 128
        %413 = vxpose.xlu0.b32.cont [5/16] %v381, 128
        %414 = vxpose.xlu0.b32.cont [6/16] %v382, 128
        %415 = vxpose.xlu0.b32.cont [7/16] %v383, 128
        %416 = vxpose.xlu0.b32.cont [8/16] %v384, 128
        %417 = vxpose.xlu0.b32.cont [9/16] 0.0, 128
        %418 = vxpose.xlu0.b32.cont [10/16] 0.0, 128
        %419 = vxpose.xlu0.b32.cont [11/16] 0.0, 128
        %420 = vxpose.xlu0.b32.cont [12/16] 0.0, 128
        %421 = vxpose.xlu0.b32.cont [13/16] 0.0, 128
        %422 = vxpose.xlu0.b32.cont [14/16] 0.0, 128
        %423 = vxpose.xlu0.b32.cont [15/16] 0.0, 128
        %424 = vxpose.xlu0.b32.end [16/16] 0.0, 128
        %v425 = vpop.trf.xlu0
        %v426 = vpop.trf.xlu0
        %v427 = vpop.trf.xlu0
        %v428 = vpop.trf.xlu0
        %v429 = vpop.trf.xlu0
        %v430 = vpop.trf.xlu0
        %v431 = vpop.trf.xlu0
        %v432 = vpop.trf.xlu0
        %v433 = vpop.trf.xlu0
        %v434 = vpop.trf.xlu0
        %v435 = vpop.trf.xlu0
        %v436 = vpop.trf.xlu0
        %v437 = vpop.trf.xlu0
        %v438 = vpop.trf.xlu0
        %v439 = vpop.trf.xlu0
        %v440 = vpop.trf.xlu0
        %vm441 = vcmask 523264
        %v443 = vsel %vm441, %v425, 0
        %v446 = vsel %vm441, %v426, 0
        %v449 = vsel %vm441, %v427, 0
        %v452 = vsel %vm441, %v428, 0
        %v455 = vsel %vm441, %v429, 0
        %v458 = vsel %vm441, %v430, 0
        %v461 = vsel %vm441, %v431, 0
        %v464 = vsel %vm441, %v432, 0
        %v467 = vsel %vm441, %v433, 0
        %v470 = vsel %vm441, %v434, 0
        %v473 = vsel %vm441, %v435, 0
        %v476 = vsel %vm441, %v436, 0
        %v479 = vsel %vm441, %v437, 0
        %v482 = vsel %vm441, %v438, 0
        %v485 = vsel %vm441, %v439, 0
        %v488 = vsel %vm441, %v440, 0
        %490 = vmatprep.subr.mxu0 0.0
        %491 = vmatpush1.msra.mxu0 0.0
        %492 = vmatprep.subr.mxu0 0.0
        %493 = vmatpush1.msra.mxu0 0.0
        %494 = vmatprep.subr.mxu0 0.0
        %495 = vmatpush1.msra.mxu0 0.0
        %496 = vmatprep.subr.mxu0 0.0
        %497 = vmatpush1.msra.mxu0 0.0
        %498 = vmatprep.subr.mxu0 0.0
        %499 = vmatpush1.msra.mxu0 0.0
        %500 = vmatprep.subr.mxu0 0.0
        %501 = vmatpush1.msra.mxu0 0.0
        %502 = vmatprep.subr.mxu0 0.0
        %503 = vmatpush1.msra.mxu0 0.0
        %504 = vmatprep.subr.mxu0 0.0
        %505 = vmatpush1.msra.mxu0 0.0
        %506 = vmatprep.subr.mxu0 0.0
        %507 = vmatpush1.msra.mxu0 %v392
        %508 = vmatprep.subr.mxu0 0.0
        %509 = vmatpush1.msra.mxu0 %v391
        %510 = vmatprep.subr.mxu0 0.0
        %511 = vmatpush1.msra.mxu0 %v390
        %512 = vmatprep.subr.mxu0 0.0
        %513 = vmatpush1.msra.mxu0 %v389
        %514 = vmatprep.subr.mxu0 0.0
        %515 = vmatpush1.msra.mxu0 %v388
        %516 = vmatprep.subr.mxu0 0.0
        %517 = vmatpush1.msra.mxu0 %v387
        %518 = vmatprep.subr.mxu0 0.0
        %519 = vmatpush1.msra.mxu0 %v386
        %520 = vmatprep.subr.mxu0 0.0
        %521 = vmatpush1.msra.mxu0 %v385
        %522 = vmatprep.subr.mxu0 0.0
        %523 = vmatpush2.msra.mxu0 0.0
        %524 = vmatprep.subr.mxu0 0.0
        %525 = vmatpush2.msra.mxu0 0.0
        %526 = vmatprep.subr.mxu0 0.0
        %527 = vmatpush2.msra.mxu0 0.0
        %528 = vmatprep.subr.mxu0 0.0
        %529 = vmatpush2.msra.mxu0 0.0
        %530 = vmatprep.subr.mxu0 0.0
        %531 = vmatpush2.msra.mxu0 0.0
        %532 = vmatprep.subr.mxu0 0.0
        %533 = vmatpush2.msra.mxu0 0.0
        %534 = vmatprep.subr.mxu0 0.0
        %535 = vmatpush2.msra.mxu0 0.0
        %536 = vmatprep.subr.mxu0 0.0
        %537 = vmatpush2.msra.mxu0 0.0
        %538 = vmatprep.subr.mxu0 0.0
        %539 = vmatpush2.msra.mxu0 0.0
        %540 = vmatprep.subr.mxu0 0.0
        %541 = vmatpush2.msra.mxu0 0.0
        %542 = vmatprep.subr.mxu0 0.0
        %543 = vmatpush2.msra.mxu0 0.0
        %544 = vmatprep.subr.mxu0 0.0
        %545 = vmatpush2.msra.mxu0 0.0
        %546 = vmatprep.subr.mxu0 0.0
        %547 = vmatpush2.msra.mxu0 0.0
        %548 = vmatprep.subr.mxu0 0.0
        %549 = vmatpush2.msra.mxu0 0.0
        %550 = vmatprep.subr.mxu0 0.0
        %551 = vmatpush2.msra.mxu0 0.0
        %552 = vmatprep.subr.mxu0 0.0
        %553 = vmatpush2.msra.mxu0 0.0
        %554 = vmatprep.mubr.f32.mxu0 0.0
        %555 = vmatmul.mubr.f32.gmra.mxu0 %v443
        %v556 = vpop.f32.mrf.mxu0
        %v557 = vadd.f32 0.0, %v556
        %v558 = vpop.f32.mrf.mxu0
        %559 = vmatprep.mubr.f32.mxu0 0.0
        %560 = vmatmul.mubr.f32.gmra.mxu0 %v446
        %v561 = vpop.f32.mrf.mxu0
        %v562 = vadd.f32 0.0, %v561
        %v563 = vpop.f32.mrf.mxu0
        %564 = vmatprep.mubr.f32.mxu0 0.0
        %565 = vmatmul.mubr.f32.gmra.mxu0 %v449
        %v566 = vpop.f32.mrf.mxu0
        %v567 = vadd.f32 0.0, %v566
        %v568 = vpop.f32.mrf.mxu0
        %569 = vmatprep.mubr.f32.mxu0 0.0
        %570 = vmatmul.mubr.f32.gmra.mxu0 %v452
        %v571 = vpop.f32.mrf.mxu0
        %v572 = vadd.f32 0.0, %v571
        %v573 = vpop.f32.mrf.mxu0
        %574 = vmatprep.mubr.f32.mxu0 0.0
        %575 = vmatmul.mubr.f32.gmra.mxu0 %v455
        %v576 = vpop.f32.mrf.mxu0
        %v577 = vadd.f32 0.0, %v576
        %v578 = vpop.f32.mrf.mxu0
        %579 = vmatprep.mubr.f32.mxu0 0.0
        %580 = vmatmul.mubr.f32.gmra.mxu0 %v458
        %v581 = vpop.f32.mrf.mxu0
        %v582 = vadd.f32 0.0, %v581
        %v583 = vpop.f32.mrf.mxu0
        %584 = vmatprep.mubr.f32.mxu0 0.0
        %585 = vmatmul.mubr.f32.gmra.mxu0 %v461
        %v586 = vpop.f32.mrf.mxu0
        %v587 = vadd.f32 0.0, %v586
        %v588 = vpop.f32.mrf.mxu0
        %589 = vmatprep.mubr.f32.mxu0 0.0
        %590 = vmatmul.mubr.f32.gmra.mxu0 %v464
        %v591 = vpop.f32.mrf.mxu0
        %v592 = vadd.f32 0.0, %v591
        %v593 = vpop.f32.mrf.mxu0
        %594 = vmatprep.mubr.f32.mxu0 0.0
        %595 = vmatmul.mubr.f32.gmra.mxu0 %v467
        %v596 = vpop.f32.mrf.mxu0
        %v597 = vadd.f32 0.0, %v596
        %v598 = vpop.f32.mrf.mxu0
        %599 = vmatprep.mubr.f32.mxu0 0.0
        %600 = vmatmul.mubr.f32.gmra.mxu0 %v470
        %v601 = vpop.f32.mrf.mxu0
        %v602 = vadd.f32 0.0, %v601
        %v603 = vpop.f32.mrf.mxu0
        %604 = vmatprep.mubr.f32.mxu0 0.0
        %605 = vmatmul.mubr.f32.gmra.mxu0 %v473
        %v606 = vpop.f32.mrf.mxu0
        %v607 = vadd.f32 0.0, %v606
        %v608 = vpop.f32.mrf.mxu0
        %609 = vmatprep.mubr.f32.mxu0 0.0
        %610 = vmatmul.mubr.f32.gmra.mxu0 %v476
        %v611 = vpop.f32.mrf.mxu0
        %v612 = vadd.f32 0.0, %v611
        %v613 = vpop.f32.mrf.mxu0
        %614 = vmatprep.mubr.f32.mxu0 0.0
        %615 = vmatmul.mubr.f32.gmra.mxu0 %v479
        %v616 = vpop.f32.mrf.mxu0
        %v617 = vadd.f32 0.0, %v616
        %v618 = vpop.f32.mrf.mxu0
        %619 = vmatprep.mubr.f32.mxu0 0.0
        %620 = vmatmul.mubr.f32.gmra.mxu0 %v482
        %v621 = vpop.f32.mrf.mxu0
        %v622 = vadd.f32 0.0, %v621
        %v623 = vpop.f32.mrf.mxu0
        %624 = vmatprep.mubr.f32.mxu0 0.0
        %625 = vmatmul.mubr.f32.gmra.mxu0 %v485
        %v626 = vpop.f32.mrf.mxu0
        %v627 = vadd.f32 0.0, %v626
        %v628 = vpop.f32.mrf.mxu0
        %629 = vmatprep.mubr.f32.mxu0 0.0
        %630 = vmatmul.mubr.f32.gmra.mxu0 %v488
        %v631 = vpop.f32.mrf.mxu0
        %v632 = vadd.f32 0.0, %v631
        %v633 = vpop.f32.mrf.mxu0
        %634 = vdwg.mxu0
        %v635 = vadd.f32 %v393, %v557
        %v636 = vadd.f32 %v394, %v562
        %v637 = vadd.f32 %v395, %v567
        %v638 = vadd.f32 %v396, %v572
        %v639 = vadd.f32 %v397, %v577
        %v640 = vadd.f32 %v398, %v582
        %v641 = vadd.f32 %v399, %v587
        %v642 = vadd.f32 %v400, %v592
        %v643 = vadd.f32 %v401, %v597
        %v644 = vadd.f32 %v402, %v602
        %v645 = vadd.f32 %v403, %v607
        %v646 = vadd.f32 %v404, %v612
        %v647 = vadd.f32 %v405, %v617
        %v648 = vadd.f32 %v406, %v622
        %v649 = vadd.f32 %v407, %v627
        %v650 = vadd.f32 %v408, %v632
        %651 = vst [vmem:[%s325] sm:$0xff] %v635
        %652 = vst [vmem:[%s325 + $0x8] sm:$0xff] %v636
        %653 = vst [vmem:[%s325 + $0x10] sm:$0xff] %v637
        %654 = vst [vmem:[%s325 + $0x18] sm:$0xff] %v638
        %655 = vst [vmem:[%s325 + $0x20] sm:$0xff] %v639
        %656 = vst [vmem:[%s325 + $0x28] sm:$0xff] %v640
        %657 = vst [vmem:[%s325 + $0x30] sm:$0xff] %v641
        %658 = vst [vmem:[%s325 + $0x38] sm:$0xff] %v642
        %659 = vst [vmem:[%s325 + $0x40] sm:$0xff] %v643
        %660 = vst [vmem:[%s325 + $0x48] sm:$0xff] %v644
        %661 = vst [vmem:[%s325 + $0x50] sm:$0xff] %v645
        %662 = vst [vmem:[%s325 + $0x58] sm:$0xff] %v646
        %663 = vst [vmem:[%s325 + $0x60] sm:$0xff] %v647
        %664 = vst [vmem:[%s325 + $0x68] sm:$0xff] %v648
        %665 = vst [vmem:[%s325 + $0x70] sm:$0xff] %v649
        %666 = vst [vmem:[%s325 + $0x78] sm:$0xff] %v650
        %v667 = vld [vmem:[%s331] sm:$0x1]
        %v668 = vadd.f32 %v377, %v378
        %v669 = vadd.f32 %v668, %v379
        %v670 = vadd.f32 %v669, %v380
        %v671 = vadd.f32 %v670, %v381
        %v672 = vadd.f32 %v671, %v382
        %v673 = vadd.f32 %v672, %v383
        %v674 = vadd.f32 %v673, %v384
        %v675 = vrot.slane %v674, 4
        %v676 = vadd.f32 %v674, %v675
        %v677 = vrot.slane %v676, 2
        %v678 = vadd.f32 %v676, %v677
        %v679 = vrot.slane %v678, 1
        %v680 = vadd.f32 %v678, %v679
        %v681 = vadd.f32 %v667, %v680
        %682 = vst [vmem:[%s331] sm:$0x1] %v681
        %v683 = vld [vmem:[%s337] sm:$0x1]
        %v684 = vmul.f32 %v377, %v377
        %v685 = vmul.f32 %v378, %v378
        %v686 = vmul.f32 %v379, %v379
        %v687 = vmul.f32 %v380, %v380
        %v688 = vmul.f32 %v381, %v381
        %v689 = vmul.f32 %v382, %v382
        %v690 = vmul.f32 %v383, %v383
        %v691 = vmul.f32 %v384, %v384
        %v692 = vadd.f32 %v684, %v685
        %v693 = vadd.f32 %v692, %v686
        %v694 = vadd.f32 %v693, %v687
        %v695 = vadd.f32 %v694, %v688
        %v696 = vadd.f32 %v695, %v689
        %v697 = vadd.f32 %v696, %v690
        %v698 = vadd.f32 %v697, %v691
        %v699 = vrot.slane %v698, 4
        %v700 = vadd.f32 %v698, %v699
        %v701 = vrot.slane %v700, 2
        %v702 = vadd.f32 %v700, %v701
        %v703 = vrot.slane %v702, 1
        %v704 = vadd.f32 %v702, %v703
        %v705 = vadd.f32 %v683, %v704
        %706 = vst [vmem:[%s337] sm:$0x1] %v705
        %v707 = vld [vmem:[%s343] sm:$0x1]
        %v708 = vmul.f32 %v385, %v385
        %v709 = vmul.f32 %v386, %v386
        %v710 = vmul.f32 %v387, %v387
        %v711 = vmul.f32 %v388, %v388
        %v712 = vmul.f32 %v389, %v389
        %v713 = vmul.f32 %v390, %v390
        %v714 = vmul.f32 %v391, %v391
        %v715 = vmul.f32 %v392, %v392
        %v716 = vadd.f32 %v708, %v709
        %v717 = vadd.f32 %v716, %v710
        %v718 = vadd.f32 %v717, %v711
        %v719 = vadd.f32 %v718, %v712
        %v720 = vadd.f32 %v719, %v713
        %v721 = vadd.f32 %v720, %v714
        %v722 = vadd.f32 %v721, %v715
        %v723 = vrot.slane %v722, 4
        %v724 = vadd.f32 %v722, %v723
        %v725 = vrot.slane %v724, 2
        %v726 = vadd.f32 %v724, %v725
        %v727 = vrot.slane %v726, 1
        %v728 = vadd.f32 %v726, %v727
        %v729 = vadd.f32 %v707, %v728
        %730 = vst [vmem:[%s343] sm:$0x1] %v729
        %s731 = sand.u32 %s120, 1
        %s732 = scalar_lea.sflag [#allocation4], %s731
        %s733 = sand.u32 %s120, 1
        %s734 = smul.addr %s733, 128
        %s735 = scalar_lea.vmem [#allocation7], %s734
        %s736 = sand.u32 %s32, 1
        %s737 = scalar_lea.sflag [#allocation9], %s736
        %s738 = sand.u32 %s146, 1
        %s739 = scalar_lea.vmem [#allocation8], %s738
        %s740 = sand.u32 %s32, 1
        %s741 = scalar_lea.sflag [#allocation9], %s740
        %s742 = sand.u32 %s172, 1
        %s743 = scalar_lea.vmem [#allocation10], %s742
        %s744 = sand.u32 %s198, 1
        %s745 = scalar_lea.sflag [#allocation12], %s744
        %s746 = sand.u32 %s198, 1
        %s747 = scalar_lea.vmem [#allocation11], %s746
        // Predicated region
        $region41: #{tpu_custom_call.1} parent=27 // pred_check
          %p748 = pneg %p130
        $region42: #{tpu_custom_call.1} parent=27 // pred_check_branch
          %750 = sbr.rel (%p748) target = $region44
        $region43: #{tpu_custom_call.1} parent=27 // pred_region
          %s752 = ssub.s32 2048, 2048
          %753 = vsyncadd %s732, %s752
          %s754 = smul.addr %s36, 16
          %s755 = smul.addr %s754, 128
          %s756 = scalar_lea.hbm %s2, %s755
          %s757 = sshll.u32 %s735, 4
          %s758 = int_to_ptr.vmem [resolvable:$true] %s757
          %763 = dma.vmem_to_hbm [thread:$0]  %s758, 2048, %s756, %s732, 128, 128, 8
        $region44: #{tpu_custom_call.1} parent=27 // pred_fallthru
          _
        // Predicated region
        $region45: #{tpu_custom_call.1} parent=27 // pred_check
          %p764 = pneg %p156
        $region46: #{tpu_custom_call.1} parent=27 // pred_check_branch
          %766 = sbr.rel (%p764) target = $region48
        $region47: #{tpu_custom_call.1} parent=27 // pred_region
          %s768 = ssub.s32 16, 16
          %769 = vsyncadd %s737, %s768
          %s770 = smul.addr %s36, 16
          %s771 = scalar_lea.hbm %s3, %s770
          %s773 = sshll.u32 %s739, 4
          %s774 = int_to_ptr.vmem [resolvable:$true] %s773
          %776 = dma.vmem_to_hbm [thread:$0]  %s774, 16, %s771, %s737
        $region48: #{tpu_custom_call.1} parent=27 // pred_fallthru
          _
        // Predicated region
        $region49: #{tpu_custom_call.1} parent=27 // pred_check
          %p777 = pneg %p182
        $region50: #{tpu_custom_call.1} parent=27 // pred_check_branch
          %779 = sbr.rel (%p777) target = $region52
        $region51: #{tpu_custom_call.1} parent=27 // pred_region
          %s781 = ssub.s32 16, 16
          %782 = vsyncadd %s741, %s781
          %s783 = smul.addr %s36, 16
          %s784 = scalar_lea.hbm %s4, %s783
          %s786 = sshll.u32 %s743, 4
          %s787 = int_to_ptr.vmem [resolvable:$true] %s786
          %789 = dma.vmem_to_hbm [thread:$0]  %s787, 16, %s784, %s741
        $region52: #{tpu_custom_call.1} parent=27 // pred_fallthru
          _
        // Predicated region
        $region53: #{tpu_custom_call.1} parent=27 // pred_check
          %p790 = pneg %p208
        $region54: #{tpu_custom_call.1} parent=27 // pred_check_branch
          %792 = sbr.rel (%p790) target = $region56
        $region55: #{tpu_custom_call.1} parent=27 // pred_region
          %s794 = ssub.s32 16, 16
          %795 = vsyncadd %s745, %s794
          %s796 = smul.addr %s36, 16
          %s797 = scalar_lea.hbm %s5, %s796
          %s799 = sshll.u32 %s747, 4
          %s800 = int_to_ptr.vmem [resolvable:$true] %s799
          %802 = dma.vmem_to_hbm [thread:$0]  %s800, 16, %s797, %s745
        $region56: #{tpu_custom_call.1} parent=27 // pred_fallthru
          _
      $region28: #{tpu_custom_call.1} parent=5 // pred_fallthru
        _
      %p803 = scmp.le.s32.totalorder 2, %s27
      // Predicated region
      $region57: #{tpu_custom_call.1} parent=5 // pred_check
        %p804 = pneg %p803
      $region58: #{tpu_custom_call.1} parent=5 // pred_check_branch
        %806 = sbr.rel (%p804) target = $region60
      $region59: #{tpu_custom_call.1} parent=5 // pred_region
        %s807 = ssub.s32 %s27, 2
        // Predicated region
        $region61: #{tpu_custom_call.1} parent=59 // pred_check
          %p808 = pneg %p136
        $region62: #{tpu_custom_call.1} parent=59 // pred_check_branch
          %810 = sbr.rel (%p808) target = $region64
        $region63: #{tpu_custom_call.1} parent=59 // pred_region
          %s811 = sand.u32 %s121, 1
          %s812 = scalar_lea.sflag [#allocation4], %s811
          %s813 = sand.u32 %s121, 1
          %s814 = smul.addr %s813, 128
          %s815 = scalar_lea.vmem [#allocation7], %s814
          %816 = dma.done %s812, 2048
        $region64: #{tpu_custom_call.1} parent=59 // pred_fallthru
          _
        // Predicated region
        $region65: #{tpu_custom_call.1} parent=59 // pred_check
          %p817 = pneg %p162
        $region66: #{tpu_custom_call.1} parent=59 // pred_check_branch
          %819 = sbr.rel (%p817) target = $region68
        $region67: #{tpu_custom_call.1} parent=59 // pred_region
          %s820 = sand.u32 %s33, 1
          %s821 = scalar_lea.sflag [#allocation9], %s820
          %s822 = sand.u32 %s147, 1
          %s823 = scalar_lea.vmem [#allocation8], %s822
          %824 = dma.done %s821, 16
        $region68: #{tpu_custom_call.1} parent=59 // pred_fallthru
          _
        // Predicated region
        $region69: #{tpu_custom_call.1} parent=59 // pred_check
          %p825 = pneg %p188
        $region70: #{tpu_custom_call.1} parent=59 // pred_check_branch
          %827 = sbr.rel (%p825) target = $region72
        $region71: #{tpu_custom_call.1} parent=59 // pred_region
          %s828 = sand.u32 %s33, 1
          %s829 = scalar_lea.sflag [#allocation9], %s828
          %s830 = sand.u32 %s173, 1
          %s831 = scalar_lea.vmem [#allocation10], %s830
          %832 = dma.done %s829, 16
        $region72: #{tpu_custom_call.1} parent=59 // pred_fallthru
          _
        // Predicated region
        $region73: #{tpu_custom_call.1} parent=59 // pred_check
          %p833 = pneg %p214
        $region74: #{tpu_custom_call.1} parent=59 // pred_check_branch
          %835 = sbr.rel (%p833) target = $region76
        $region75: #{tpu_custom_call.1} parent=59 // pred_region
          %s836 = sand.u32 %s199, 1
          %s837 = scalar_lea.sflag [#allocation12], %s836
          %s838 = sand.u32 %s199, 1
          %s839 = scalar_lea.vmem [#allocation11], %s838
          %840 = dma.done %s837, 16
        $region76: #{tpu_custom_call.1} parent=59 // pred_fallthru
          _
      $region60: #{tpu_custom_call.1} parent=5 // pred_fallthru
        _
    $region6: #{tpu_custom_call.1} parent=1 // loop_footer
      %s31 = sadd.s32 1, %s27
    $region7: #{tpu_custom_call.1} parent=1 // loop_footer_branch
      %26 = sbr.rel target = $region3
    $region8: #{tpu_custom_call.1} parent=1 // loop_exit
      _
    %841 = vsyncpa [#allocation3], 1
    %s842 = scalar_lea.sflag [#allocation3], 1
    %843 = vsyncpa %s842, 1
    %844 = vsyncpa [#allocation6], 1
    %s845 = scalar_lea.sflag [#allocation6], 1
    %846 = vsyncpa %s845, 1
    %847 = vsyncpa [#allocation4], 1
    %s848 = scalar_lea.sflag [#allocation4], 1
    %849 = vsyncpa %s848, 1
    %850 = vsyncpa [#allocation9], 1
    %s851 = scalar_lea.sflag [#allocation9], 1
    %852 = vsyncpa %s851, 1
    %853 = vsyncpa [#allocation12], 1
    %s854 = scalar_lea.sflag [#allocation12], 1
    %855 = vsyncpa %s854, 1

</llo_original>
